<compile_context>
chip_gen: v7x
topology: tpu7x:2x2x1
jax: 0.10.0
libtpu: 0.0.40
codegen_flags: <defaults>
</compile_context>

<pallas_src>
import math
from functools import partial

import jax
import jax.numpy as jnp
from jax import lax
from jax.experimental import pallas as pl
from jax.experimental.pallas import tpu as pltpu


# --------------------------------------------------------------------------
# Pallas kernel 1: tiled linear layer  y = x @ W_t + b   (W_t pre-transposed)
# --------------------------------------------------------------------------
def _linear_kernel(x_ref, w_ref, b_ref, o_ref, acc_ref):
    k = pl.program_id(2)

    @pl.when(k == 0)
    def _():
        acc_ref[...] = jnp.zeros_like(acc_ref)

    acc_ref[...] += jnp.dot(x_ref[...], w_ref[...],
                            preferred_element_type=jnp.float32)

    @pl.when(k == pl.num_programs(2) - 1)
    def _():
        o_ref[...] = (acc_ref[...] + b_ref[...].astype(jnp.float32)
                      ).astype(o_ref.dtype)


def _tile(dim, target):
    """Pick a tile size: full dim if small/indivisible, else the target."""
    if dim <= target:
        return dim
    if dim % target == 0:
        return target
    return dim


def pallas_linear(x, w_t, b, *, tm_target=256, tn_target=256, tk_target=512):
    """x: (M, K) bf16, w_t: (K, N) pre-transposed weight, b: (N,) -> (M, N) bf16."""
    M, K = x.shape
    K2, N = w_t.shape
    assert K == K2
    tm = _tile(M, tm_target)
    tn = _tile(N, tn_target)
    tk = _tile(K, tk_target)
    b2 = b.reshape(1, N)
    return pl.pallas_call(
        _linear_kernel,
        out_shape=jax.ShapeDtypeStruct((M, N), x.dtype),
        grid=(M // tm, N // tn, K // tk),
        in_specs=[
            pl.BlockSpec((tm, tk), lambda i, j, k: (i, k)),
            pl.BlockSpec((tk, tn), lambda i, j, k: (k, j)),
            pl.BlockSpec((1, tn), lambda i, j, k: (0, j)),
        ],
        out_specs=pl.BlockSpec((tm, tn), lambda i, j, k: (i, j)),
        scratch_shapes=[pltpu.VMEM((tm, tn), jnp.float32)],
        compiler_params=pltpu.CompilerParams(
            dimension_semantics=("parallel", "parallel", "arbitrary")),
    )(x, w_t, b2)


# --------------------------------------------------------------------------
# Pallas kernel 2: rotary embedding + scaled dot-product attention
# grid = (B,); each program handles all heads of one batch element.
# Layout: q (Sq, H*D), kv (Sk, 2*H*D) [K | V], output (Sq, H*D).
# --------------------------------------------------------------------------
def _attn_kernel(q_ref, kv_ref, cq_ref, sq_ref, ck_ref, sk_ref, o_ref,
                 *, num_heads, head_size, scale):
    H, D = num_heads, head_size
    half = D // 2

    cq = cq_ref[...]          # (Sq, D) bf16
    sq = sq_ref[...]
    ck = ck_ref[...]          # (Sk, D) bf16
    sk = sk_ref[...]

    def rot_half(x):
        x1 = x[:, :half]
        x2 = x[:, half:]
        return jnp.concatenate([-x2, x1], axis=-1)

    outs = []
    for h in range(H):                                   # static loop over heads
        qh = q_ref[:, h * D:(h + 1) * D]                 # (Sq, D) bf16
        kh = kv_ref[:, h * D:(h + 1) * D]                # (Sk, D) bf16
        vh = kv_ref[:, H * D + h * D:H * D + (h + 1) * D]

        # apply_rotary_pos_emb (in bf16, matching the reference)
        q_rot = qh * cq + rot_half(qh) * sq
        k_rot = kh * ck + rot_half(kh) * sk

        # scores: contract on D (no in-kernel transpose), f32 accumulation
        scores = lax.dot_general(
            q_rot, k_rot, (((1,), (1,)), ((), ())),
            preferred_element_type=jnp.float32) * scale

        m = jnp.max(scores, axis=-1, keepdims=True)
        p = jnp.exp(scores - m)
        denom = jnp.sum(p, axis=-1, keepdims=True)
        attn = p * pl.reciprocal(denom, approx=True)

        out_h = jnp.dot(attn.astype(vh.dtype), vh,
                        preferred_element_type=jnp.float32)
        outs.append(out_h)

    o_ref[...] = jnp.concatenate(outs, axis=-1).astype(o_ref.dtype)


def pallas_attention(q, kv, cos_q, sin_q, cos_k, sin_k, *, num_heads, head_size):
    """q: (B, Sq, H*D), kv: (B, Sk, 2*H*D) -> (B, Sq, H*D)."""
    B, Sq, HD = q.shape
    _, Sk, _ = kv.shape
    D = head_size
    scale = 1.0 / math.sqrt(D)

    kernel = partial(_attn_kernel, num_heads=num_heads, head_size=D, scale=scale)
    return pl.pallas_call(
        kernel,
        out_shape=jax.ShapeDtypeStruct((B, Sq, HD), q.dtype),
        grid=(B,),
        in_specs=[
            pl.BlockSpec((None, Sq, HD), lambda b: (b, 0, 0)),       # q
            pl.BlockSpec((None, Sk, 2 * HD), lambda b: (b, 0, 0)),   # kv (K|V fused)
            pl.BlockSpec((Sq, D), lambda b: (0, 0)),                 # cos_q
            pl.BlockSpec((Sq, D), lambda b: (0, 0)),                 # sin_q
            pl.BlockSpec((Sk, D), lambda b: (0, 0)),                 # cos_k
            pl.BlockSpec((Sk, D), lambda b: (0, 0)),                 # sin_k
        ],
        out_specs=pl.BlockSpec((None, Sq, HD), lambda b: (b, 0, 0)),
        compiler_params=pltpu.CompilerParams(
            dimension_semantics=("parallel",)),
    )(q, kv, cos_q, sin_q, cos_k, sin_k)


# --------------------------------------------------------------------------
# Rotary tables (matches RotaryEmbedding._update_cos_sin_tables, sliced to S)
# --------------------------------------------------------------------------
def rotary_tables(seq_len, dim):
    max_seq_length = 65536.0
    inv_freq = 1.0 / max_seq_length ** (
        jnp.arange(0, dim, 2, dtype=jnp.float32) / dim)
    t = jnp.arange(seq_len, dtype=jnp.float32)
    freqs = jnp.outer(t, inv_freq)                       # (S, D/2)
    emb = jnp.concatenate([freqs, freqs], axis=-1)       # (S, D)
    return jnp.cos(emb).astype(jnp.bfloat16), jnp.sin(emb).astype(jnp.bfloat16)


# --------------------------------------------------------------------------
# CrossAttention forward
# --------------------------------------------------------------------------
def cross_attention(params, input_embeds, condition_embeds, num_heads, head_size):
    B, Sq, hidden = input_embeds.shape
    _, Sk, _ = condition_embeds.shape
    H, D = num_heads, head_size

    # Q projection on input_embeds; fused K|V projection on condition_embeds
    q = pallas_linear(input_embeds.reshape(B * Sq, hidden),
                      params["wq_t"], params["bq"])                 # (B*Sq, H*D)
    kv = pallas_linear(condition_embeds.reshape(B * Sk, hidden),
                       params["wkv_t"], params["bkv"])              # (B*Sk, 2*H*D)

    q = q.reshape(B, Sq, H * D)
    kv = kv.reshape(B, Sk, 2 * H * D)

    cos_q, sin_q = rotary_tables(Sq, D)
    cos_k, sin_k = rotary_tables(Sk, D)

    # rotary + attention, all heads per program, output stays (B, Sq, H*D)
    attn = pallas_attention(q, kv, cos_q, sin_q, cos_k, sin_k,
                            num_heads=H, head_size=D)

    # output projection
    out = pallas_linear(attn.reshape(B * Sq, H * D),
                        params["wo_t"], params["bo"])
    return out.reshape(B, Sq, hidden)


# --------------------------------------------------------------------------
# main
# --------------------------------------------------------------------------
if __name__ == "__main__":
    B, Sq, Sk = 2, 16, 8
    hidden, num_heads, head_size = 32, 2, 16

    key = jax.random.PRNGKey(0)
    ks = jax.random.split(key, 6)

    def init_linear(k, out_f, in_f):
        bound = 1.0 / math.sqrt(in_f)
        kw, kb = jax.random.split(k)
        w = jax.random.uniform(kw, (out_f, in_f), jnp.float32,
                               -bound, bound).astype(jnp.bfloat16)
        b = jax.random.uniform(kb, (out_f,), jnp.float32,
                               -bound, bound).astype(jnp.bfloat16)
        return w, b

    wq, bq = init_linear(ks[0], num_heads * head_size, hidden)
    wk, bk = init_linear(ks[1], num_heads * head_size, hidden)
    wv, bv = init_linear(ks[2], num_heads * head_size, hidden)
    wo, bo = init_linear(ks[3], hidden, num_heads * head_size)

    # Pre-transpose once at init (K, N layout); fuse K and V along output dim.
    params = dict(
        wq_t=wq.T, bq=bq,
        wkv_t=jnp.concatenate([wk.T, wv.T], axis=1),
        bkv=jnp.concatenate([bk, bv], axis=0),
        wo_t=wo.T, bo=bo,
    )

    input_embeds = jax.random.normal(ks[4], (B, Sq, hidden),
                                     jnp.float32).astype(jnp.bfloat16)
    condition_embeds = jax.random.normal(ks[5], (B, Sk, hidden),
                                         jnp.float32).astype(jnp.bfloat16)

    out = cross_attention(params, input_embeds, condition_embeds,
                          num_heads, head_size)
    out = jax.block_until_ready(out)
    assert out.shape == (B, Sq, hidden) and out.dtype == jnp.bfloat16
    print("KERNEL_OK")
</pallas_src>

<mosaic_0001>
module attributes {stable_mosaic.version = 11 : i64} {
  func.func @_linear_kernel(%arg0: i32, %arg1: i32, %arg2: i32, %arg3: memref<32x32xbf16, #tpu.memory_space<vmem>>, %arg4: memref<32x32xbf16, #tpu.memory_space<vmem>>, %arg5: memref<1x32xbf16, #tpu.memory_space<vmem>>, %arg6: memref<32x32xbf16, #tpu.memory_space<vmem>>, %arg7: memref<32x32xf32, #tpu.memory_space<vmem>>) attributes {dimension_semantics = [#tpu.dimension_semantics<parallel>, #tpu.dimension_semantics<parallel>, #tpu.dimension_semantics<arbitrary>], iteration_bounds = array<i64: 1, 1, 1>, scalar_prefetch = 0 : i64, scratch_operands = 1 : i64, tpu.core_type = #tpu.core_type<tc>, window_params = [{transform_indices = @transform_0, window_bounds = array<i64: 32, 32>}, {transform_indices = @transform_1, window_bounds = array<i64: 32, 32>}, {transform_indices = @transform_2, window_bounds = array<i64: 1, 32>}, {transform_indices = @transform_3, window_bounds = array<i64: 32, 32>}]} {
    %c0_i32 = arith.constant 0 : i32
    %0 = arith.cmpi eq, %arg2, %c0_i32 : i32
    %1 = arith.extui %0 : i1 to i32
    %c0_i32_0 = arith.constant 0 : i32
    %2 = arith.cmpi ne, %1, %c0_i32_0 : i32
    scf.if %2 {
      %cst_10 = arith.constant 0.000000e+00 : f32
      %12 = vector.broadcast %cst_10 : f32 to vector<32x32xf32>
      %c0_11 = arith.constant 0 : index
      %c0_12 = arith.constant 0 : index
      %13 = vector.load %arg7[%c0_11, %c0_12] : memref<32x32xf32, #tpu.memory_space<vmem>>, vector<32x32xf32>
      tpu.vector_store %arg7[%c0_11, %c0_12], %12 {strides = array<i32>} : memref<32x32xf32, #tpu.memory_space<vmem>>, vector<32x32xf32>,
    } else {
    }
    %c0 = arith.constant 0 : index
    %c0_1 = arith.constant 0 : index
    %3 = vector.load %arg7[%c0, %c0_1] : memref<32x32xf32, #tpu.memory_space<vmem>>, vector<32x32xf32>
    %c0_2 = arith.constant 0 : index
    %c0_3 = arith.constant 0 : index
    %4 = vector.load %arg3[%c0_2, %c0_3] : memref<32x32xbf16, #tpu.memory_space<vmem>>, vector<32x32xbf16>
    %c0_4 = arith.constant 0 : index
    %c0_5 = arith.constant 0 : index
    %5 = vector.load %arg4[%c0_4, %c0_5] : memref<32x32xbf16, #tpu.memory_space<vmem>>, vector<32x32xbf16>
    %cst = arith.constant dense<0.000000e+00> : vector<32x32xf32>
    %6 = tpu.matmul %4, %5, %cst {dimension_numbers = #tpu.dot_dimension_numbers<[1], [0], [0], [1], [0, 0, 1, 1], [], []>} : vector<32x32xbf16>, vector<32x32xbf16>, vector<32x32xf32> -> vector<32x32xf32>
    %7 = arith.addf %3, %6 : vector<32x32xf32>
    %c0_6 = arith.constant 0 : index
    %c0_7 = arith.constant 0 : index
    %8 = vector.load %arg7[%c0_6, %c0_7] : memref<32x32xf32, #tpu.memory_space<vmem>>, vector<32x32xf32>
    tpu.vector_store %arg7[%c0_6, %c0_7], %7 {strides = array<i32>} : memref<32x32xf32, #tpu.memory_space<vmem>>, vector<32x32xf32>,
    %c0_i32_8 = arith.constant 0 : i32
    %9 = arith.cmpi eq, %arg2, %c0_i32_8 : i32
    %10 = arith.extui %9 : i1 to i32
    %c0_i32_9 = arith.constant 0 : i32
    %11 = arith.cmpi ne, %10, %c0_i32_9 : i32
    scf.if %11 {
      %c0_10 = arith.constant 0 : index
      %c0_11 = arith.constant 0 : index
      %12 = vector.load %arg7[%c0_10, %c0_11] : memref<32x32xf32, #tpu.memory_space<vmem>>, vector<32x32xf32>
      %c0_12 = arith.constant 0 : index
      %c0_13 = arith.constant 0 : index
      %13 = vector.load %arg5[%c0_12, %c0_13] : memref<1x32xbf16, #tpu.memory_space<vmem>>, vector<1x32xbf16>
      %14 = arith.extf %13 : vector<1x32xbf16> to vector<1x32xf32>
      %15 = vector.broadcast %14 : vector<1x32xf32> to vector<32x32xf32>
      %16 = arith.addf %12, %15 : vector<32x32xf32>
      %17 = arith.truncf %16 : vector<32x32xf32> to vector<32x32xbf16>
      %c0_14 = arith.constant 0 : index
      %c0_15 = arith.constant 0 : index
      %18 = vector.load %arg6[%c0_14, %c0_15] : memref<32x32xbf16, #tpu.memory_space<vmem>>, vector<32x32xbf16>
      tpu.vector_store %arg6[%c0_14, %c0_15], %17 {strides = array<i32>} : memref<32x32xbf16, #tpu.memory_space<vmem>>, vector<32x32xbf16>,
    } else {
    }
    return
  }
  func.func @transform_0(%arg0: i32, %arg1: i32, %arg2: i32) -> (i32, i32) {
    %c0_i32 = arith.constant 0 : i32
    return %arg0, %arg2 : i32, i32
  }
  func.func @transform_1(%arg0: i32, %arg1: i32, %arg2: i32) -> (i32, i32) {
    %c0_i32 = arith.constant 0 : i32
    return %arg2, %arg1 : i32, i32
  }
  func.func @transform_2(%arg0: i32, %arg1: i32, %arg2: i32) -> (i32, i32) {
    %c0_i32 = arith.constant 0 : i32
    %c0_i32_0 = arith.constant 0 : i32
    return %c0_i32, %arg1 : i32, i32
  }
  func.func @transform_3(%arg0: i32, %arg1: i32, %arg2: i32) -> (i32, i32) {
    %c0_i32 = arith.constant 0 : i32
    return %arg0, %arg1 : i32, i32
  }
}

</mosaic_0001>

<llo_original>
// kernel: tpu_custom_call.1
$region0: #{tpu_custom_call.1}
  #allocation0 [shape = 'u32[]', space=smem, size = 0x4, offset = 0x4, fixed_abs, tag = 'smem constant byte address 0x4 - core index']
  #allocation1 [shape = 'u32[144,128]{1,0:T(1,128)}', space=vmem, size = 0x12000, scoped, tag = 'internal scratch']
  #allocation2 [shape = 'f32[32,32]{1,0:T(8,128)}', space=vmem, size = 0x4000, scoped, tag = 'scratch operand']
  %s0 = inlined_call_operand.hbm [shape: bf16[32,32], index: 0, kind: input, shape index: {}]
  %s1 = inlined_call_operand.hbm [shape: bf16[32,32], index: 1, kind: input, shape index: {}]
  %s2 = inlined_call_operand.vmem [shape: bf16[1,32], index: 2, kind: input, shape index: {}]
  %s3 = inlined_call_operand.hbm [shape: bf16[32,32], index: 3, kind: output, shape index: {}]
  %s4 = sld [smem:[#allocation0]]
  $region38: #{tpu_custom_call.1} parent=0
    _
  %s6 = ssub.s32 1, %s4
  %s7 = scalar_select 0, %s6, %s4
  $region1: #{tpu_custom_call.1} parent=0
    #allocation3 [shape = 'u8[8192]{0}', space=vmem, size = 0x2000, scoped, tag = 'input window, operand 0, single buffered']
    #allocation4 [shape = 's32[1]{0}', space=sflag, size = 0x4, scoped, tag = 'scoped memory for tpu_custom_call.1']
    #allocation5 [shape = 's32[1]{0}', space=sflag, size = 0x4, scoped, tag = 'scoped memory for tpu_custom_call.1']
    #allocation6 [shape = 'u8[8192]{0}', space=vmem, size = 0x2000, scoped, tag = 'input window, operand 1, single buffered']
    #allocation7 [shape = 's32[1]{0}', space=sflag, size = 0x4, scoped, tag = 'scoped memory for tpu_custom_call.1']
    #allocation8 [shape = 'u8[8192]{0}', space=vmem, size = 0x2000, scoped, tag = 'output window, operand 0, single buffered']
    %8 = vsyncpa [#allocation4], 0
    %9 = vsyncpa [#allocation7], 0
    %10 = vsyncpa [#allocation5], 0
    // Predicated region
    $region2: #{tpu_custom_call.1} parent=1 // pred_check
      _
    $region3: #{tpu_custom_call.1} parent=1 // pred_check_branch
      %12 = sbr.rel (0) target = $region5
    $region4: #{tpu_custom_call.1} parent=1 // pred_region
      %s14 = ssub.s32 256, 256
      %15 = vsyncadd [#allocation4], %s14
      %s16 = sshll.u32 [#allocation3], 4
      %s17 = int_to_ptr.vmem [resolvable:$true] %s16
      %22 = dma.hbm_to_vmem [thread:$0]  %s0, 256, %s17, [#allocation4], 64, 64, 4
    $region5: #{tpu_custom_call.1} parent=1 // pred_fallthru
      _
    // Predicated region
    $region6: #{tpu_custom_call.1} parent=1 // pred_check
      _
    $region7: #{tpu_custom_call.1} parent=1 // pred_check_branch
      %24 = sbr.rel (0) target = $region9
    $region8: #{tpu_custom_call.1} parent=1 // pred_region
      %s26 = ssub.s32 256, 256
      %27 = vsyncadd [#allocation7], %s26
      %s28 = sshll.u32 [#allocation6], 4
      %s29 = int_to_ptr.vmem [resolvable:$true] %s28
      %34 = dma.hbm_to_vmem [thread:$0]  %s1, 256, %s29, [#allocation7], 64, 64, 4
    $region9: #{tpu_custom_call.1} parent=1 // pred_fallthru
      _
    // Predicated region
    $region10: #{tpu_custom_call.1} parent=1 // pred_check
      _
    $region11: #{tpu_custom_call.1} parent=1 // pred_check_branch
      %36 = sbr.rel (0) target = $region13
    $region12: #{tpu_custom_call.1} parent=1 // pred_region
      _
    $region13: #{tpu_custom_call.1} parent=1 // pred_fallthru
      _
    // Predicated region
    $region14: #{tpu_custom_call.1} parent=1 // pred_check
      _
    $region15: #{tpu_custom_call.1} parent=1 // pred_check_branch
      %38 = sbr.rel (0) target = $region17
    $region16: #{tpu_custom_call.1} parent=1 // pred_region
      %39 = dma.done [#allocation4], 256
    $region17: #{tpu_custom_call.1} parent=1 // pred_fallthru
      _
    // Predicated region
    $region18: #{tpu_custom_call.1} parent=1 // pred_check
      _
    $region19: #{tpu_custom_call.1} parent=1 // pred_check_branch
      %41 = sbr.rel (0) target = $region21
    $region20: #{tpu_custom_call.1} parent=1 // pred_region
      %42 = dma.done [#allocation7], 256
    $region21: #{tpu_custom_call.1} parent=1 // pred_fallthru
      _
    %p44 = scmp.eq.s32.totalorder 0, 0
    // Predicated region
    $region22: #{tpu_custom_call.1} parent=1 // pred_check
      %p45 = pneg %p44
    $region23: #{tpu_custom_call.1} parent=1 // pred_check_branch
      %47 = sbr.rel (%p45) target = $region25
    $region24: #{tpu_custom_call.1} parent=1 // pred_region
      %vm48 = vcmask 261120
      %49 = vst.msk [vmem:[#allocation2] sm:$0xff] %vm48, 0.0
      %50 = vst.msk [vmem:[#allocation2 + $0x8] sm:$0xff] %vm48, 0.0
      %51 = vst.msk [vmem:[#allocation2 + $0x10] sm:$0xff] %vm48, 0.0
      %52 = vst.msk [vmem:[#allocation2 + $0x18] sm:$0xff] %vm48, 0.0
    $region25: #{tpu_custom_call.1} parent=1 // pred_fallthru
      _
    %v53 = vld [vmem:[#allocation2] sm:$0xff]
    %v54 = vld [vmem:[#allocation2 + $0x8] sm:$0xff]
    %v55 = vld [vmem:[#allocation2 + $0x10] sm:$0xff]
    %v56 = vld [vmem:[#allocation2 + $0x18] sm:$0xff]
    %v57 = vld [vmem:[#allocation3] sm:$0xf]
    %v58 = vld [vmem:[#allocation3 + $0x4] sm:$0xf]
    %v59 = vld [vmem:[#allocation3 + $0x8] sm:$0xf]
    %v60 = vld [vmem:[#allocation3 + $0xc] sm:$0xf]
    %v61 = vld [vmem:[#allocation6] sm:$0xf]
    %v62 = vld [vmem:[#allocation6 + $0x4] sm:$0xf]
    %v63 = vld [vmem:[#allocation6 + $0x8] sm:$0xf]
    %v64 = vld [vmem:[#allocation6 + $0xc] sm:$0xf]
    %v69 = vunpack.c.l.b16 %v57
    %v70 = vunpack.c.l.b16 %v58
    %v71 = vunpack.c.l.b16 %v59
    %v72 = vunpack.c.l.b16 %v60
    %v73 = vpack.c.b16 %v70, %v69
    %v74 = vpack.c.b16 %v72, %v71
    %v79 = vunpack.c.l.b16 %v61
    %v80 = vunpack.c.l.b16 %v62
    %v81 = vunpack.c.l.b16 %v63
    %v82 = vunpack.c.l.b16 %v64
    %v83 = vpack.c.b16 %v80, %v79
    %v84 = vpack.c.b16 %v82, %v81
    %vm87 = vcmask 261120
    %v89 = vsel %vm87, %v73, 0
    %v92 = vsel %vm87, %v74, 0
    %94 = vmatprep.subr.bf16.mxu0 0
    %95 = vmatpush1.bf16.msra.mxu0 %v83
    %96 = vmatprep.subr.bf16.mxu0 0
    %97 = vmatpush1.bf16.msra.mxu0 %v84
    %98 = vmatprep.subr.bf16.mxu0 0
    %99 = vmatpush1.bf16.msra.mxu0 0
    %100 = vmatprep.subr.bf16.mxu0 0
    %101 = vmatpush1.bf16.msra.mxu0 0
    %102 = vmatprep.subr.bf16.mxu0 0
    %103 = vmatpush1.bf16.msra.mxu0 0
    %104 = vmatprep.subr.bf16.mxu0 0
    %105 = vmatpush1.bf16.msra.mxu0 0
    %106 = vmatprep.subr.bf16.mxu0 0
    %107 = vmatpush1.bf16.msra.mxu0 0
    %108 = vmatprep.subr.bf16.mxu0 0
    %109 = vmatpush1.bf16.msra.mxu0 0
    %110 = vmatprep.subr.bf16.mxu0 0
    %111 = vmatpush1.bf16.msra.mxu0 0
    %112 = vmatprep.subr.bf16.mxu0 0
    %113 = vmatpush1.bf16.msra.mxu0 0
    %114 = vmatprep.subr.bf16.mxu0 0
    %115 = vmatpush1.bf16.msra.mxu0 0
    %116 = vmatprep.subr.bf16.mxu0 0
    %117 = vmatpush1.bf16.msra.mxu0 0
    %118 = vmatprep.subr.bf16.mxu0 0
    %119 = vmatpush1.bf16.msra.mxu0 0
    %120 = vmatprep.subr.bf16.mxu0 0
    %121 = vmatpush1.bf16.msra.mxu0 0
    %122 = vmatprep.subr.bf16.mxu0 0
    %123 = vmatpush1.bf16.msra.mxu0 0
    %124 = vmatprep.subr.bf16.mxu0 0
    %125 = vmatpush1.bf16.msra.mxu0 0
    %126 = vmatprep.mubr.bf16.mxu0 0
    %127 = vmatmul.mubr.bf16.gmra.mrb[0].mxu0 %v89
    %v128 = vpop.f32.mrb[0].mxu0
    %v129 = vadd.f32 0.0, %v128
    %v130 = vpop.f32.mrb[0].mxu0
    %v131 = vpop.f32.mrb[0].mxu0
    %v132 = vadd.f32 0.0, %v131
    %v133 = vpop.f32.mrb[0].mxu0
    %134 = vmatprep.mubr.bf16.mxu0 0
    %135 = vmatmul.mubr.bf16.gmra.mrb[0].mxu0 %v92
    %v136 = vpop.f32.mrb[0].mxu0
    %v137 = vadd.f32 0.0, %v136
    %v138 = vpop.f32.mrb[0].mxu0
    %v139 = vpop.f32.mrb[0].mxu0
    %v140 = vadd.f32 0.0, %v139
    %v141 = vpop.f32.mrb[0].mxu0
    %142 = vdwg.mxu0
    %v143 = vadd.f32 %v53, %v129
    %v144 = vadd.f32 %v54, %v132
    %v145 = vadd.f32 %v55, %v137
    %v146 = vadd.f32 %v56, %v140
    %147 = vst.msk [vmem:[#allocation2] sm:$0xff] %vm87, %v143
    %148 = vst.msk [vmem:[#allocation2 + $0x8] sm:$0xff] %vm87, %v144
    %149 = vst.msk [vmem:[#allocation2 + $0x10] sm:$0xff] %vm87, %v145
    %150 = vst.msk [vmem:[#allocation2 + $0x18] sm:$0xff] %vm87, %v146
    // Predicated region
    $region26: #{tpu_custom_call.1} parent=1 // pred_check
      %p151 = pneg %p44
    $region27: #{tpu_custom_call.1} parent=1 // pred_check_branch
      %153 = sbr.rel (%p151) target = $region29
    $region28: #{tpu_custom_call.1} parent=1 // pred_region
      %v154 = vld [vmem:[#allocation2] sm:$0xff]
      %v155 = vld [vmem:[#allocation2 + $0x8] sm:$0xff]
      %v156 = vld [vmem:[#allocation2 + $0x10] sm:$0xff]
      %v157 = vld [vmem:[#allocation2 + $0x18] sm:$0xff]
      %v158 = vld [vmem:[%s2] sm:$0x1]
      %v159 = vunpack.c.l.bf16 %v158
      %v160 = vlaneseq
      %v161 = vshrl.u32 %v160, 7
      %v162 = vsub.s32 0, %v161
      %v163 = vrot.slane %v159, %v162
      %v164 = vadd.f32 %v154, %v163
      %v165 = vadd.f32 %v155, %v163
      %v166 = vadd.f32 %v156, %v163
      %v167 = vadd.f32 %v157, %v163
      %v168 = vpack.c.bf16 %v165, %v164
      %v169 = vpack.c.bf16 %v167, %v166
      %v172 = vunpack.c.l.b16 %v168
      %v173 = vunpack.c.h.b16 %v168
      %v174 = vunpack.c.l.b16 %v169
      %v175 = vunpack.c.h.b16 %v169
      %v176 = vpack.c.b16 %v172, %v172
      %v177 = vpack.c.b16 %v173, %v173
      %v178 = vpack.c.b16 %v174, %v174
      %v179 = vpack.c.b16 %v175, %v175
      %vm184 = vcmask 257024
      %185 = vst.msk [vmem:[#allocation8] sm:$0xf] %vm184, %v176
      %186 = vst.msk [vmem:[#allocation8 + $0x4] sm:$0xf] %vm184, %v177
      %187 = vst.msk [vmem:[#allocation8 + $0x8] sm:$0xf] %vm184, %v178
      %188 = vst.msk [vmem:[#allocation8 + $0xc] sm:$0xf] %vm184, %v179
    $region29: #{tpu_custom_call.1} parent=1 // pred_fallthru
      _
    // Predicated region
    $region30: #{tpu_custom_call.1} parent=1 // pred_check
      _
    $region31: #{tpu_custom_call.1} parent=1 // pred_check_branch
      %190 = sbr.rel (0) target = $region33
    $region32: #{tpu_custom_call.1} parent=1 // pred_region
      %s192 = ssub.s32 256, 256
      %193 = vsyncadd [#allocation5], %s192
      %s194 = sshll.u32 [#allocation8], 4
      %s195 = int_to_ptr.vmem [resolvable:$true] %s194
      %200 = dma.vmem_to_hbm [thread:$0]  %s195, 256, %s3, [#allocation5], 64, 64, 4
    $region33: #{tpu_custom_call.1} parent=1 // pred_fallthru
      _
    // Predicated region
    $region34: #{tpu_custom_call.1} parent=1 // pred_check
      _
    $region35: #{tpu_custom_call.1} parent=1 // pred_check_branch
      %202 = sbr.rel (0) target = $region37
    $region36: #{tpu_custom_call.1} parent=1 // pred_region
      %203 = dma.done [#allocation5], 256
    $region37: #{tpu_custom_call.1} parent=1 // pred_fallthru
      _
    %204 = vsyncpa [#allocation4], 1
    %205 = vsyncpa [#allocation7], 1
    %206 = vsyncpa [#allocation5], 1

</llo_original>
